<compile_context>
chip_gen: v7x
topology: tpu7x:2x2x1
jax: 0.10.0
libtpu: 0.0.40
codegen_flags: <defaults>
</compile_context>

<pallas_src>
import functools

import jax
import jax.numpy as jnp
from jax.experimental import pallas as pl
from jax.experimental.pallas import tpu as pltpu

KH = KW = 3
EPS = 1e-5                      # nn.BatchNorm2d default eps
MATMUL_DTYPE = jnp.bfloat16     # MXU operand dtype (accumulation stays float32)


def conv_bn_relu_kernel(x_ref, mask_ref, w_ref, gb_ref, o_ref, *, W):
    """x_ref:    (N, Cpad, H*W)        input, pixels lane-dense, channels padded to 8
       mask_ref: (9, N*H*W)            precomputed boundary masks per 3x3 tap (0/1)
       w_ref:    (Cout, 9*Cpad)        conv weight, rows ordered (kh, kw, cin_pad)
       gb_ref:   (Cout, 2)             column 0 = BN gamma, column 1 = BN beta
       o_ref:    (N, Cout, H*W)        output, pixels lane-dense"""
    N, Cpad, HW = x_ref.shape
    Cout = o_ref.shape[1]
    NHW = N * HW

    # Channels on sublanes, all pixels on lanes: (Cpad, N*H*W); 128-aligned concat.
    x = jnp.concatenate([x_ref[i] for i in range(N)], axis=1)       # (Cpad, NHW) f32
    masks = mask_ref[...]                                           # (9, NHW)   f32

    # im2col via lane rotation: tap[(kh,kw)][c, (n,h,w)] = x_padded[n, c, h+kh-1, w+kw-1].
    # pltpu.roll wraps circularly across the whole N*H*W axis, but every wrapped /
    # cross-image lane is provably an out-of-bounds (h+dh, w+dw) position for
    # |dh|,|dw| <= 1, so the precomputed mask zeros it (zero padding fused here).
    taps = []
    t = 0
    for dh in (-1, 0, 1):
        for dw in (-1, 0, 1):
            delta = dh * W + dw
            if delta == 0:
                taps.append(x)                                      # centre tap: no roll, no mask
            else:
                rolled = pltpu.roll(x, shift=(-delta) % NHW, axis=1)  # XLU lane rotate
                taps.append(rolled * masks[t:t + 1])                  # one VPU multiply
            t += 1
    # 8-aligned sublane concat (Cpad = 8), then a single cast for the MXU operand.
    patches_t = jnp.concatenate(taps, axis=0).astype(MATMUL_DTYPE)  # (9*Cpad, NHW)

    # Single MXU matmul, K = 9*Cpad = 72.  Result (Cout, NHW) f32 is lane-dense and
    # only ~4 vregs, so no scratch accumulator / spill traffic is needed.
    acc = jnp.dot(w_ref[...].astype(MATMUL_DTYPE), patches_t,
                  preferred_element_type=jnp.float32)               # (Cout, NHW)

    # BatchNorm2d with training-mode batch statistics; centred (two-pass) variance
    # to avoid E[x^2]-E[x]^2 cancellation.  The conv bias is omitted: BN mean
    # subtraction cancels it exactly.
    inv_n = 1.0 / NHW
    mean = jnp.sum(acc, axis=1, keepdims=True) * inv_n              # (Cout, 1)
    centered = acc - mean
    var = jnp.sum(centered * centered, axis=1, keepdims=True) * inv_n
    inv_std = jax.lax.rsqrt(var + EPS)
    scale = gb_ref[:, 0:1] * inv_std                                # gamma * inv_std
    y = jnp.maximum(centered * scale + gb_ref[:, 1:2], 0.0)         # BN + ReLU

    # Dense per-image stores: (Cout, H*W) with H*W = 256 = 2*128 (unmasked vst).
    for i in range(N):
        o_ref[i] = y[:, i * HW:(i + 1) * HW].astype(o_ref.dtype)
    # TODO(synk): BatchNorm running_mean/running_var buffer updates (training-time
    # side effect) are not materialized; only the forward output is produced.


def conv_bn_relu(x_nchw, weight_oihw, conv_bias, gamma, beta):
    """x_nchw: (N, Cin, H, W) float32 (PyTorch convention). Returns (N, Cout, H, W)."""
    del conv_bias  # exactly cancelled by training-mode BN mean subtraction
    N, Cin, H, W = x_nchw.shape
    Cout = weight_oihw.shape[0]
    HW = H * W
    NHW = N * HW
    CIN_PAD = max(8, ((Cin + 7) // 8) * 8)   # sublane-aligned channel count

    # Channel-pad the input (tiny, done once in HBM) so in-kernel tap concats are
    # 8-sublane aligned; no spatial padding (fused in-kernel via the masks).
    x_flat = jnp.pad(x_nchw, ((0, 0), (0, CIN_PAD - Cin), (0, 0), (0, 0))
                     ).reshape(N, CIN_PAD, HW)
    # (Cout, 9*Cpad), rows ordered (kh, kw, cin_pad); padded-channel rows are zero.
    w_pad = jnp.pad(weight_oihw, ((0, 0), (0, CIN_PAD - Cin), (0, 0), (0, 0)))
    w_mat = jnp.transpose(w_pad, (0, 2, 3, 1)).reshape(Cout, KH * KW * CIN_PAD)
    # Combined BN params: one DMA instead of two masked (Cout,1) loads.
    gb = jnp.stack([gamma, beta], axis=1)                           # (Cout, 2)

    # Precomputed 3x3 boundary masks (zero padding fused into the kernel): (9, NHW).
    cols = jnp.arange(NHW, dtype=jnp.int32)
    wi = cols % W
    hi = (cols // W) % H
    mask_rows = []
    for dh in (-1, 0, 1):
        for dw in (-1, 0, 1):
            mask_rows.append((hi + dh >= 0) & (hi + dh < H) &
                             (wi + dw >= 0) & (wi + dw < W))
    mask9 = jnp.stack(mask_rows).astype(jnp.float32)                # (9, NHW)

    kernel = functools.partial(conv_bn_relu_kernel, W=W)
    out = pl.pallas_call(
        kernel,
        out_shape=jax.ShapeDtypeStruct((N, Cout, HW), jnp.float32),
        grid=(1,),  # toy problem fits VMEM; see TODO below for real shapes
        in_specs=[
            pl.BlockSpec((N, CIN_PAD, HW), lambda i: (0, 0, 0)),
            pl.BlockSpec((KH * KW, NHW), lambda i: (0, 0)),
            pl.BlockSpec((Cout, KH * KW * CIN_PAD), lambda i: (0, 0)),
            pl.BlockSpec((Cout, 2), lambda i: (0, 0)),
        ],
        out_specs=pl.BlockSpec((N, Cout, HW), lambda i: (0, 0, 0)),
        compiler_params=pltpu.CompilerParams(
            dimension_semantics=("arbitrary",)),
    )(x_flat, mask9, w_mat, gb)
    # TODO(synk): for non-toy shapes, tile the grid over (N, H-tiles) marked
    # "parallel" (megacore on v7x) with a final "arbitrary" BN-combine axis:
    # accumulate per-tile sum / sum-of-squares into persistent VMEM scratch and
    # finalize under pl.when(last) (two-pass BN).  Budget VMEM explicitly for the
    # 9x im2col blow-up + f32 acc + 2x input double-buffering, sizing tiles for
    # v7x's 64 MiB physical / 32 MiB scoped VMEM (about half the v6e tile) and
    # v5e's 16 MiB scoped default, and set vmem_limit_bytes accordingly.
    # grid=(1,) is only for this toy size.

    return out.reshape(N, Cout, H, W)   # free reshape back to NCHW


def _reference(x_nchw, weight_oihw, conv_bias, gamma, beta):
    """Pure-JAX reference (same semantics, f32, bias kept) for a sanity check."""
    y = jax.lax.conv_general_dilated(
        x_nchw, weight_oihw, window_strides=(1, 1), padding=((1, 1), (1, 1)),
        dimension_numbers=("NCHW", "OIHW", "NCHW"))
    y = y + conv_bias.reshape(1, -1, 1, 1)
    mean = jnp.mean(y, axis=(0, 2, 3), keepdims=True)
    var = jnp.mean((y - mean) ** 2, axis=(0, 2, 3), keepdims=True)   # biased (training BN)
    y = (y - mean) * jax.lax.rsqrt(var + EPS)
    y = y * gamma.reshape(1, -1, 1, 1) + beta.reshape(1, -1, 1, 1)
    return jnp.maximum(y, 0.0)


if __name__ == "__main__":
    # Small shapes consistent with the module: batch=2, in_channels=4,
    # out_channels=8, spatial=16.
    N, CIN, COUT, H, W = 2, 4, 8, 16, 16

    key = jax.random.PRNGKey(0)
    kx, kw, kb, kg, kbeta = jax.random.split(key, 5)
    x = jax.random.normal(kx, (N, CIN, H, W), dtype=jnp.float32)
    weight = jax.random.normal(kw, (COUT, CIN, KH, KW), dtype=jnp.float32) * 0.1
    conv_bias = jax.random.normal(kb, (COUT,), dtype=jnp.float32) * 0.1
    gamma = 1.0 + 0.1 * jax.random.normal(kg, (COUT,), dtype=jnp.float32)
    beta = 0.1 * jax.random.normal(kbeta, (COUT,), dtype=jnp.float32)

    out = conv_bn_relu(x, weight, conv_bias, gamma, beta)
    jax.block_until_ready(out)

    ref = _reference(x, weight, conv_bias, gamma, beta)
    assert out.shape == (N, COUT, H, W)
    # bf16 MXU operands (f32 accumulation): bf16-appropriate tolerance.
    err = float(jnp.max(jnp.abs(out - ref)))
    assert jnp.allclose(out, ref, atol=3e-2, rtol=3e-2), err

    print("KERNEL_OK")
</pallas_src>

<mosaic_0001>
module attributes {stable_mosaic.version = 11 : i64} {
  func.func @conv_bn_relu_kernel(%arg0: i32, %arg1: memref<2x8x256xf32, #tpu.memory_space<vmem>>, %arg2: memref<9x512xf32, #tpu.memory_space<vmem>>, %arg3: memref<8x72xf32, #tpu.memory_space<vmem>>, %arg4: memref<8x2xf32, #tpu.memory_space<vmem>>, %arg5: memref<2x8x256xf32, #tpu.memory_space<vmem>>) attributes {dimension_semantics = [#tpu.dimension_semantics<arbitrary>], iteration_bounds = array<i64: 1>, scalar_prefetch = 0 : i64, scratch_operands = 0 : i64, tpu.core_type = #tpu.core_type<tc>, window_params = [{pipeline_mode = #tpu.pipeline_mode<synchronous>, transform_indices = @transform_0, window_bounds = array<i64: 2, 8, 256>}, {pipeline_mode = #tpu.pipeline_mode<synchronous>, transform_indices = @transform_1, window_bounds = array<i64: 9, 512>}, {pipeline_mode = #tpu.pipeline_mode<synchronous>, transform_indices = @transform_2, window_bounds = array<i64: 8, 72>}, {pipeline_mode = #tpu.pipeline_mode<synchronous>, transform_indices = @transform_3, window_bounds = array<i64: 8, 2>}, {pipeline_mode = #tpu.pipeline_mode<synchronous>, transform_indices = @transform_4, window_bounds = array<i64: 2, 8, 256>}]} {
    %c0 = arith.constant 0 : index
    %c0_0 = arith.constant 0 : index
    %c0_1 = arith.constant 0 : index
    %0 = vector.load %arg1[%c0, %c0_0, %c0_1] : memref<2x8x256xf32, #tpu.memory_space<vmem>>, vector<1x8x256xf32>
    %1 = vector.shape_cast %0 : vector<1x8x256xf32> to vector<8x256xf32>
    %c1 = arith.constant 1 : index
    %c0_2 = arith.constant 0 : index
    %c0_3 = arith.constant 0 : index
    %2 = vector.load %arg1[%c1, %c0_2, %c0_3] : memref<2x8x256xf32, #tpu.memory_space<vmem>>, vector<1x8x256xf32>
    %3 = vector.shape_cast %2 : vector<1x8x256xf32> to vector<8x256xf32>
    %4 = tpu.concatenate %1, %3 in 1 : vector<8x256xf32>, vector<8x256xf32> -> vector<8x512xf32>
    %c0_4 = arith.constant 0 : index
    %c0_5 = arith.constant 0 : index
    %5 = vector.load %arg2[%c0_4, %c0_5] : memref<9x512xf32, #tpu.memory_space<vmem>>, vector<9x512xf32>
    %c17_i32 = arith.constant 17 : i32
    %6 = tpu.dynamic_rotate %4 by %c17_i32 dim 1 : vector<8x512xf32>, i32 -> vector<8x512xf32>
    %7 = vector.extract_strided_slice %5 {offsets = [0, 0], sizes = [1, 512], strides = [1, 1]} : vector<9x512xf32> to vector<1x512xf32>
    %8 = vector.broadcast %7 : vector<1x512xf32> to vector<8x512xf32>
    %9 = arith.mulf %6, %8 : vector<8x512xf32>
    %c16_i32 = arith.constant 16 : i32
    %10 = tpu.dynamic_rotate %4 by %c16_i32 dim 1 : vector<8x512xf32>, i32 -> vector<8x512xf32>
    %11 = vector.extract_strided_slice %5 {offsets = [1, 0], sizes = [1, 512], strides = [1, 1]} : vector<9x512xf32> to vector<1x512xf32>
    %12 = vector.broadcast %11 : vector<1x512xf32> to vector<8x512xf32>
    %13 = arith.mulf %10, %12 : vector<8x512xf32>
    %c15_i32 = arith.constant 15 : i32
    %14 = tpu.dynamic_rotate %4 by %c15_i32 dim 1 : vector<8x512xf32>, i32 -> vector<8x512xf32>
    %15 = vector.extract_strided_slice %5 {offsets = [2, 0], sizes = [1, 512], strides = [1, 1]} : vector<9x512xf32> to vector<1x512xf32>
    %16 = vector.broadcast %15 : vector<1x512xf32> to vector<8x512xf32>
    %17 = arith.mulf %14, %16 : vector<8x512xf32>
    %c1_i32 = arith.constant 1 : i32
    %18 = tpu.dynamic_rotate %4 by %c1_i32 dim 1 : vector<8x512xf32>, i32 -> vector<8x512xf32>
    %19 = vector.extract_strided_slice %5 {offsets = [3, 0], sizes = [1, 512], strides = [1, 1]} : vector<9x512xf32> to vector<1x512xf32>
    %20 = vector.broadcast %19 : vector<1x512xf32> to vector<8x512xf32>
    %21 = arith.mulf %18, %20 : vector<8x512xf32>
    %c511_i32 = arith.constant 511 : i32
    %22 = tpu.dynamic_rotate %4 by %c511_i32 dim 1 : vector<8x512xf32>, i32 -> vector<8x512xf32>
    %23 = vector.extract_strided_slice %5 {offsets = [5, 0], sizes = [1, 512], strides = [1, 1]} : vector<9x512xf32> to vector<1x512xf32>
    %24 = vector.broadcast %23 : vector<1x512xf32> to vector<8x512xf32>
    %25 = arith.mulf %22, %24 : vector<8x512xf32>
    %c497_i32 = arith.constant 497 : i32
    %26 = tpu.dynamic_rotate %4 by %c497_i32 dim 1 : vector<8x512xf32>, i32 -> vector<8x512xf32>
    %27 = vector.extract_strided_slice %5 {offsets = [6, 0], sizes = [1, 512], strides = [1, 1]} : vector<9x512xf32> to vector<1x512xf32>
    %28 = vector.broadcast %27 : vector<1x512xf32> to vector<8x512xf32>
    %29 = arith.mulf %26, %28 : vector<8x512xf32>
    %c496_i32 = arith.constant 496 : i32
    %30 = tpu.dynamic_rotate %4 by %c496_i32 dim 1 : vector<8x512xf32>, i32 -> vector<8x512xf32>
    %31 = vector.extract_strided_slice %5 {offsets = [7, 0], sizes = [1, 512], strides = [1, 1]} : vector<9x512xf32> to vector<1x512xf32>
    %32 = vector.broadcast %31 : vector<1x512xf32> to vector<8x512xf32>
    %33 = arith.mulf %30, %32 : vector<8x512xf32>
    %c495_i32 = arith.constant 495 : i32
    %34 = tpu.dynamic_rotate %4 by %c495_i32 dim 1 : vector<8x512xf32>, i32 -> vector<8x512xf32>
    %35 = vector.extract_strided_slice %5 {offsets = [8, 0], sizes = [1, 512], strides = [1, 1]} : vector<9x512xf32> to vector<1x512xf32>
    %36 = vector.broadcast %35 : vector<1x512xf32> to vector<8x512xf32>
    %37 = arith.mulf %34, %36 : vector<8x512xf32>
    %38 = tpu.concatenate %9, %13, %17, %21, %4, %25, %29, %33, %37 in 0 : vector<8x512xf32>, vector<8x512xf32>, vector<8x512xf32>, vector<8x512xf32>, vector<8x512xf32>, vector<8x512xf32>, vector<8x512xf32>, vector<8x512xf32>, vector<8x512xf32> -> vector<72x512xf32>
    %39 = arith.truncf %38 : vector<72x512xf32> to vector<72x512xbf16>
    %c0_6 = arith.constant 0 : index
    %c0_7 = arith.constant 0 : index
    %40 = vector.load %arg3[%c0_6, %c0_7] : memref<8x72xf32, #tpu.memory_space<vmem>>, vector<8x72xf32>
    %41 = arith.truncf %40 : vector<8x72xf32> to vector<8x72xbf16>
    %cst = arith.constant dense<0.000000e+00> : vector<8x512xf32>
    %42 = tpu.matmul %41, %39, %cst {dimension_numbers = #tpu.dot_dimension_numbers<[1], [0], [0], [1], [0, 0, 1, 1], [], []>} : vector<8x72xbf16>, vector<72x512xbf16>, vector<8x512xf32> -> vector<8x512xf32>
    %cst_8 = arith.constant dense<0.000000e+00> : vector<8xf32>
    %43 = vector.multi_reduction <add>, %42, %cst_8 [1] : vector<8x512xf32> to vector<8xf32>
    %44 = vector.shape_cast %43 : vector<8xf32> to vector<8x1xf32>
    %cst_9 = arith.constant 0.001953125 : f32
    %45 = vector.broadcast %cst_9 : f32 to vector<8x1xf32>
    %46 = arith.mulf %44, %45 : vector<8x1xf32>
    %47 = vector.broadcast %46 : vector<8x1xf32> to vector<8x512xf32>
    %48 = arith.subf %42, %47 : vector<8x512xf32>
    %49 = arith.mulf %48, %48 : vector<8x512xf32>
    %cst_10 = arith.constant dense<0.000000e+00> : vector<8xf32>
    %50 = vector.multi_reduction <add>, %49, %cst_10 [1] : vector<8x512xf32> to vector<8xf32>
    %51 = vector.shape_cast %50 : vector<8xf32> to vector<8x1xf32>
    %cst_11 = arith.constant 0.001953125 : f32
    %52 = vector.broadcast %cst_11 : f32 to vector<8x1xf32>
    %53 = arith.mulf %51, %52 : vector<8x1xf32>
    %cst_12 = arith.constant 9.99999974E-6 : f32
    %54 = vector.broadcast %cst_12 : f32 to vector<8x1xf32>
    %55 = arith.addf %53, %54 : vector<8x1xf32>
    %56 = math.rsqrt %55 : vector<8x1xf32>
    %c0_13 = arith.constant 0 : index
    %c0_14 = arith.constant 0 : index
    %57 = vector.load %arg4[%c0_13, %c0_14] : memref<8x2xf32, #tpu.memory_space<vmem>>, vector<8x1xf32>
    %58 = arith.mulf %57, %56 : vector<8x1xf32>
    %59 = vector.broadcast %58 : vector<8x1xf32> to vector<8x512xf32>
    %60 = arith.mulf %48, %59 : vector<8x512xf32>
    %c0_15 = arith.constant 0 : index
    %c1_16 = arith.constant 1 : index
    %61 = vector.load %arg4[%c0_15, %c1_16] : memref<8x2xf32, #tpu.memory_space<vmem>>, vector<8x1xf32>
    %62 = vector.broadcast %61 : vector<8x1xf32> to vector<8x512xf32>
    %63 = arith.addf %60, %62 : vector<8x512xf32>
    %cst_17 = arith.constant 0.000000e+00 : f32
    %64 = vector.broadcast %cst_17 : f32 to vector<8x512xf32>
    %65 = arith.maximumf %63, %64 : vector<8x512xf32>
    %66 = vector.extract_strided_slice %65 {offsets = [0, 0], sizes = [8, 256], strides = [1, 1]} : vector<8x512xf32> to vector<8x256xf32>
    %c0_18 = arith.constant 0 : index
    %c0_19 = arith.constant 0 : index
    %c0_20 = arith.constant 0 : index
    %67 = vector.load %arg5[%c0_18, %c0_19, %c0_20] : memref<2x8x256xf32, #tpu.memory_space<vmem>>, vector<1x8x256xf32>
    %68 = vector.shape_cast %67 : vector<1x8x256xf32> to vector<8x256xf32>
    %69 = vector.shape_cast %66 : vector<8x256xf32> to vector<1x8x256xf32>
    tpu.vector_store %arg5[%c0_18, %c0_19, %c0_20], %69 {strides = array<i32>} : memref<2x8x256xf32, #tpu.memory_space<vmem>>, vector<1x8x256xf32>,
    %70 = vector.extract_strided_slice %65 {offsets = [0, 256], sizes = [8, 256], strides = [1, 1]} : vector<8x512xf32> to vector<8x256xf32>
    %c1_21 = arith.constant 1 : index
    %c0_22 = arith.constant 0 : index
    %c0_23 = arith.constant 0 : index
    %71 = vector.load %arg5[%c1_21, %c0_22, %c0_23] : memref<2x8x256xf32, #tpu.memory_space<vmem>>, vector<1x8x256xf32>
    %72 = vector.shape_cast %71 : vector<1x8x256xf32> to vector<8x256xf32>
    %73 = vector.shape_cast %70 : vector<8x256xf32> to vector<1x8x256xf32>
    tpu.vector_store %arg5[%c1_21, %c0_22, %c0_23], %73 {strides = array<i32>} : memref<2x8x256xf32, #tpu.memory_space<vmem>>, vector<1x8x256xf32>,
    return
  }
  func.func @transform_0(%arg0: i32) -> (i32, i32, i32) {
    %c0_i32 = arith.constant 0 : i32
    %c0_i32_0 = arith.constant 0 : i32
    %c0_i32_1 = arith.constant 0 : i32
    %c0_i32_2 = arith.constant 0 : i32
    return %c0_i32, %c0_i32_0, %c0_i32_1 : i32, i32, i32
  }
  func.func @transform_1(%arg0: i32) -> (i32, i32) {
    %c0_i32 = arith.constant 0 : i32
    %c0_i32_0 = arith.constant 0 : i32
    %c0_i32_1 = arith.constant 0 : i32
    return %c0_i32, %c0_i32_0 : i32, i32
  }
  func.func @transform_2(%arg0: i32) -> (i32, i32) {
    %c0_i32 = arith.constant 0 : i32
    %c0_i32_0 = arith.constant 0 : i32
    %c0_i32_1 = arith.constant 0 : i32
    return %c0_i32, %c0_i32_0 : i32, i32
  }
  func.func @transform_3(%arg0: i32) -> (i32, i32) {
    %c0_i32 = arith.constant 0 : i32
    %c0_i32_0 = arith.constant 0 : i32
    %c0_i32_1 = arith.constant 0 : i32
    return %c0_i32, %c0_i32_0 : i32, i32
  }
  func.func @transform_4(%arg0: i32) -> (i32, i32, i32) {
    %c0_i32 = arith.constant 0 : i32
    %c0_i32_0 = arith.constant 0 : i32
    %c0_i32_1 = arith.constant 0 : i32
    %c0_i32_2 = arith.constant 0 : i32
    return %c0_i32, %c0_i32_0, %c0_i32_1 : i32, i32, i32
  }
}

</mosaic_0001>

<llo_original>
// kernel: tpu_custom_call.1
$region0: #{tpu_custom_call.1}
  #allocation0 [shape = 'u32[]', space=smem, size = 0x4, offset = 0x4, fixed_abs, tag = 'smem constant byte address 0x4 - core index']
  #allocation1 [shape = 'u32[144,128]{1,0:T(1,128)}', space=vmem, size = 0x12000, scoped, tag = 'internal scratch']
  %s0 = inlined_call_operand.hbm [shape: f32[2,8,256], index: 0, kind: input, shape index: {}]
  %s1 = inlined_call_operand.hbm [shape: f32[9,512], index: 1, kind: input, shape index: {}]
  %s2 = inlined_call_operand.vmem [shape: f32[8,72], index: 2, kind: input, shape index: {}]
  %s3 = inlined_call_operand.vmem [shape: f32[8,2], index: 3, kind: input, shape index: {}]
  %s4 = inlined_call_operand.hbm [shape: f32[2,8,256], index: 4, kind: output, shape index: {}]
  %s5 = sld [smem:[#allocation0]]
  $region34: #{tpu_custom_call.1} parent=0
    _
  %s7 = ssub.s32 1, %s5
  %s8 = scalar_select 0, %s7, %s5
  $region1: #{tpu_custom_call.1} parent=0
    #allocation2 [shape = 'u8[16384]{0}', space=vmem, size = 0x4000, scoped, tag = 'input window, operand 0, single buffered']
    #allocation3 [shape = 's32[1]{0}', space=sflag, size = 0x4, scoped, tag = 'scoped memory for tpu_custom_call.1']
    #allocation4 [shape = 's32[1]{0}', space=sflag, size = 0x4, scoped, tag = 'scoped memory for tpu_custom_call.1']
    #allocation5 [shape = 'u8[32768]{0}', space=vmem, size = 0x8000, scoped, tag = 'input window, operand 1, single buffered']
    #allocation6 [shape = 's32[1]{0}', space=sflag, size = 0x4, scoped, tag = 'scoped memory for tpu_custom_call.1']
    #allocation7 [shape = 'u8[16384]{0}', space=vmem, size = 0x4000, scoped, tag = 'output window, operand 0, single buffered']
    %9 = vsyncpa [#allocation3], 0
    %10 = vsyncpa [#allocation6], 0
    %11 = vsyncpa [#allocation4], 0
    // Predicated region
    $region2: #{tpu_custom_call.1} parent=1 // pred_check
      _
    $region3: #{tpu_custom_call.1} parent=1 // pred_check_branch
      %13 = sbr.rel (0) target = $region5
    $region4: #{tpu_custom_call.1} parent=1 // pred_region
      %s15 = ssub.s32 512, 512
      %16 = vsyncadd [#allocation3], %s15
      %s17 = sshll.u32 [#allocation2], 4
      %s18 = int_to_ptr.vmem [resolvable:$true] %s17
      %23 = dma.hbm_to_vmem [thread:$0]  %s0, 512, %s18, [#allocation3], 256, 256, 16
    $region5: #{tpu_custom_call.1} parent=1 // pred_fallthru
      _
    // Predicated region
    $region6: #{tpu_custom_call.1} parent=1 // pred_check
      _
    $region7: #{tpu_custom_call.1} parent=1 // pred_check_branch
      %25 = sbr.rel (0) target = $region9
    $region8: #{tpu_custom_call.1} parent=1 // pred_region
      %s27 = ssub.s32 1024, 1024
      %28 = vsyncadd [#allocation6], %s27
      %s29 = sshll.u32 [#allocation5], 4
      %s30 = int_to_ptr.vmem [resolvable:$true] %s29
      %35 = dma.hbm_to_vmem [thread:$0]  %s1, 1024, %s30, [#allocation6], 512, 512, 32
    $region9: #{tpu_custom_call.1} parent=1 // pred_fallthru
      _
    // Predicated region
    $region10: #{tpu_custom_call.1} parent=1 // pred_check
      _
    $region11: #{tpu_custom_call.1} parent=1 // pred_check_branch
      %37 = sbr.rel (0) target = $region13
    $region12: #{tpu_custom_call.1} parent=1 // pred_region
      _
    $region13: #{tpu_custom_call.1} parent=1 // pred_fallthru
      _
    // Predicated region
    $region14: #{tpu_custom_call.1} parent=1 // pred_check
      _
    $region15: #{tpu_custom_call.1} parent=1 // pred_check_branch
      %39 = sbr.rel (0) target = $region17
    $region16: #{tpu_custom_call.1} parent=1 // pred_region
      _
    $region17: #{tpu_custom_call.1} parent=1 // pred_fallthru
      _
    // Predicated region
    $region18: #{tpu_custom_call.1} parent=1 // pred_check
      _
    $region19: #{tpu_custom_call.1} parent=1 // pred_check_branch
      %41 = sbr.rel (0) target = $region21
    $region20: #{tpu_custom_call.1} parent=1 // pred_region
      %42 = dma.done [#allocation3], 512
    $region21: #{tpu_custom_call.1} parent=1 // pred_fallthru
      _
    // Predicated region
    $region22: #{tpu_custom_call.1} parent=1 // pred_check
      _
    $region23: #{tpu_custom_call.1} parent=1 // pred_check_branch
      %44 = sbr.rel (0) target = $region25
    $region24: #{tpu_custom_call.1} parent=1 // pred_region
      %45 = dma.done [#allocation6], 1024
    $region25: #{tpu_custom_call.1} parent=1 // pred_fallthru
      _
    %v47 = vld [vmem:[#allocation2] sm:$0xff]
    %v48 = vld [vmem:[#allocation2 + $0x8] sm:$0xff]
    %s49 = scalar_lea.vmem [#allocation2], 16
    %v50 = vld [vmem:[%s49] sm:$0xff]
    %v51 = vld [vmem:[%s49 + $0x8] sm:$0xff]
    %v52 = vld [vmem:[#allocation5] sm:$0xff]
    %v53 = vld [vmem:[#allocation5 + $0x8] sm:$0xff]
    %v54 = vld [vmem:[#allocation5 + $0x10] sm:$0xff]
    %v55 = vld [vmem:[#allocation5 + $0x18] sm:$0xff]
    %v56 = vld [vmem:[#allocation5 + $0x20] sm:$0x1]
    %v57 = vld [vmem:[#allocation5 + $0x28] sm:$0x1]
    %v58 = vld [vmem:[#allocation5 + $0x30] sm:$0x1]
    %v59 = vld [vmem:[#allocation5 + $0x38] sm:$0x1]
    %60 = vrot.lane.b32.xlu0 %v47, 17
    %v61 = vpop.permute.xlu0 %60
    %62 = vrot.lane.b32.xlu0 %v48, 17
    %v63 = vpop.permute.xlu0 %62
    %64 = vrot.lane.b32.xlu0 %v50, 17
    %v65 = vpop.permute.xlu0 %64
    %66 = vrot.lane.b32.xlu0 %v51, 17
    %v67 = vpop.permute.xlu0 %66
    %v68 = vlaneseq
    %v69 = vand.u32 %v68, 127
    %vm70 = vcmp.lt.s32.totalorder %v69, 17
    %v71 = vsel %vm70, %v65, %v67
    %v72 = vsel %vm70, %v63, %v65
    %v73 = vsel %vm70, %v61, %v63
    %v74 = vsel %vm70, %v67, %v61
    %v75 = vlaneseq
    %v76 = vshrl.u32 %v75, 7
    %v77 = vsub.s32 0, %v76
    %v78 = vrot.slane %v52, %v77
    %v79 = vlaneseq
    %v80 = vshrl.u32 %v79, 7
    %v81 = vsub.s32 0, %v80
    %v82 = vrot.slane %v53, %v81
    %v83 = vlaneseq
    %v84 = vshrl.u32 %v83, 7
    %v85 = vsub.s32 0, %v84
    %v86 = vrot.slane %v54, %v85
    %v87 = vlaneseq
    %v88 = vshrl.u32 %v87, 7
    %v89 = vsub.s32 0, %v88
    %v90 = vrot.slane %v55, %v89
    %v91 = vmul.f32 %v74, %v78
    %v92 = vmul.f32 %v73, %v82
    %v93 = vmul.f32 %v72, %v86
    %v94 = vmul.f32 %v71, %v90
    %95 = vrot.lane.b32.xlu0 %v47, 16
    %v96 = vpop.permute.xlu0 %95
    %97 = vrot.lane.b32.xlu0 %v48, 16
    %v98 = vpop.permute.xlu0 %97
    %99 = vrot.lane.b32.xlu0 %v50, 16
    %v100 = vpop.permute.xlu0 %99
    %101 = vrot.lane.b32.xlu0 %v51, 16
    %v102 = vpop.permute.xlu0 %101
    %vm103 = vcmp.lt.s32.totalorder %v69, 16
    %v104 = vsel %vm103, %v100, %v102
    %v105 = vsel %vm103, %v98, %v100
    %v106 = vsel %vm103, %v96, %v98
    %v107 = vsel %vm103, %v102, %v96
    %v108 = vlaneseq
    %v109 = vshrl.u32 %v108, 7
    %v110 = vsub.s32 1, %v109
    %v111 = vrot.slane %v52, %v110
    %v112 = vlaneseq
    %v113 = vshrl.u32 %v112, 7
    %v114 = vsub.s32 1, %v113
    %v115 = vrot.slane %v53, %v114
    %v116 = vlaneseq
    %v117 = vshrl.u32 %v116, 7
    %v118 = vsub.s32 1, %v117
    %v119 = vrot.slane %v54, %v118
    %v120 = vlaneseq
    %v121 = vshrl.u32 %v120, 7
    %v122 = vsub.s32 1, %v121
    %v123 = vrot.slane %v55, %v122
    %v124 = vmul.f32 %v107, %v111
    %v125 = vmul.f32 %v106, %v115
    %v126 = vmul.f32 %v105, %v119
    %v127 = vmul.f32 %v104, %v123
    %128 = vrot.lane.b32.xlu0 %v47, 15
    %v129 = vpop.permute.xlu0 %128
    %130 = vrot.lane.b32.xlu0 %v48, 15
    %v131 = vpop.permute.xlu0 %130
    %132 = vrot.lane.b32.xlu0 %v50, 15
    %v133 = vpop.permute.xlu0 %132
    %134 = vrot.lane.b32.xlu0 %v51, 15
    %v135 = vpop.permute.xlu0 %134
    %vm136 = vcmp.lt.s32.totalorder %v69, 15
    %v137 = vsel %vm136, %v133, %v135
    %v138 = vsel %vm136, %v131, %v133
    %v139 = vsel %vm136, %v129, %v131
    %v140 = vsel %vm136, %v135, %v129
    %v141 = vlaneseq
    %v142 = vshrl.u32 %v141, 7
    %v143 = vsub.s32 2, %v142
    %v144 = vrot.slane %v52, %v143
    %v145 = vlaneseq
    %v146 = vshrl.u32 %v145, 7
    %v147 = vsub.s32 2, %v146
    %v148 = vrot.slane %v53, %v147
    %v149 = vlaneseq
    %v150 = vshrl.u32 %v149, 7
    %v151 = vsub.s32 2, %v150
    %v152 = vrot.slane %v54, %v151
    %v153 = vlaneseq
    %v154 = vshrl.u32 %v153, 7
    %v155 = vsub.s32 2, %v154
    %v156 = vrot.slane %v55, %v155
    %v157 = vmul.f32 %v140, %v144
    %v158 = vmul.f32 %v139, %v148
    %v159 = vmul.f32 %v138, %v152
    %v160 = vmul.f32 %v137, %v156
    %161 = vrot.lane.b32.xlu0 %v47, 1
    %v162 = vpop.permute.xlu0 %161
    %163 = vrot.lane.b32.xlu0 %v48, 1
    %v164 = vpop.permute.xlu0 %163
    %165 = vrot.lane.b32.xlu0 %v50, 1
    %v166 = vpop.permute.xlu0 %165
    %167 = vrot.lane.b32.xlu0 %v51, 1
    %v168 = vpop.permute.xlu0 %167
    %vm169 = vcmp.lt.s32.totalorder %v69, 1
    %v170 = vsel %vm169, %v166, %v168
    %v171 = vsel %vm169, %v164, %v166
    %v172 = vsel %vm169, %v162, %v164
    %v173 = vsel %vm169, %v168, %v162
    %v174 = vlaneseq
    %v175 = vshrl.u32 %v174, 7
    %v176 = vsub.s32 3, %v175
    %v177 = vrot.slane %v52, %v176
    %v178 = vlaneseq
    %v179 = vshrl.u32 %v178, 7
    %v180 = vsub.s32 3, %v179
    %v181 = vrot.slane %v53, %v180
    %v182 = vlaneseq
    %v183 = vshrl.u32 %v182, 7
    %v184 = vsub.s32 3, %v183
    %v185 = vrot.slane %v54, %v184
    %v186 = vlaneseq
    %v187 = vshrl.u32 %v186, 7
    %v188 = vsub.s32 3, %v187
    %v189 = vrot.slane %v55, %v188
    %v190 = vmul.f32 %v173, %v177
    %v191 = vmul.f32 %v172, %v181
    %v192 = vmul.f32 %v171, %v185
    %v193 = vmul.f32 %v170, %v189
    %194 = vrot.lane.b32.xlu0 %v47, 127
    %v195 = vpop.permute.xlu0 %194
    %196 = vrot.lane.b32.xlu0 %v48, 127
    %v197 = vpop.permute.xlu0 %196
    %198 = vrot.lane.b32.xlu0 %v50, 127
    %v199 = vpop.permute.xlu0 %198
    %200 = vrot.lane.b32.xlu0 %v51, 127
    %v201 = vpop.permute.xlu0 %200
    %vm202 = vcmp.lt.s32.totalorder %v69, 127
    %v203 = vsel %vm202, %v199, %v201
    %v204 = vsel %vm202, %v197, %v199
    %v205 = vsel %vm202, %v195, %v197
    %v206 = vsel %vm202, %v201, %v195
    %v207 = vlaneseq
    %v208 = vshrl.u32 %v207, 7
    %v209 = vsub.s32 5, %v208
    %v210 = vrot.slane %v52, %v209
    %v211 = vlaneseq
    %v212 = vshrl.u32 %v211, 7
    %v213 = vsub.s32 5, %v212
    %v214 = vrot.slane %v53, %v213
    %v215 = vlaneseq
    %v216 = vshrl.u32 %v215, 7
    %v217 = vsub.s32 5, %v216
    %v218 = vrot.slane %v54, %v217
    %v219 = vlaneseq
    %v220 = vshrl.u32 %v219, 7
    %v221 = vsub.s32 5, %v220
    %v222 = vrot.slane %v55, %v221
    %v223 = vmul.f32 %v205, %v210
    %v224 = vmul.f32 %v204, %v214
    %v225 = vmul.f32 %v203, %v218
    %v226 = vmul.f32 %v206, %v222
    %227 = vrot.lane.b32.xlu0 %v47, 113
    %v228 = vpop.permute.xlu0 %227
    %229 = vrot.lane.b32.xlu0 %v48, 113
    %v230 = vpop.permute.xlu0 %229
    %231 = vrot.lane.b32.xlu0 %v50, 113
    %v232 = vpop.permute.xlu0 %231
    %233 = vrot.lane.b32.xlu0 %v51, 113
    %v234 = vpop.permute.xlu0 %233
    %vm235 = vcmp.lt.s32.totalorder %v69, 113
    %v236 = vsel %vm235, %v232, %v234
    %v237 = vsel %vm235, %v230, %v232
    %v238 = vsel %vm235, %v228, %v230
    %v239 = vsel %vm235, %v234, %v228
    %v240 = vlaneseq
    %v241 = vshrl.u32 %v240, 7
    %v242 = vsub.s32 6, %v241
    %v243 = vrot.slane %v52, %v242
    %v244 = vlaneseq
    %v245 = vshrl.u32 %v244, 7
    %v246 = vsub.s32 6, %v245
    %v247 = vrot.slane %v53, %v246
    %v248 = vlaneseq
    %v249 = vshrl.u32 %v248, 7
    %v250 = vsub.s32 6, %v249
    %v251 = vrot.slane %v54, %v250
    %v252 = vlaneseq
    %v253 = vshrl.u32 %v252, 7
    %v254 = vsub.s32 6, %v253
    %v255 = vrot.slane %v55, %v254
    %v256 = vmul.f32 %v238, %v243
    %v257 = vmul.f32 %v237, %v247
    %v258 = vmul.f32 %v236, %v251
    %v259 = vmul.f32 %v239, %v255
    %260 = vrot.lane.b32.xlu0 %v47, 112
    %v261 = vpop.permute.xlu0 %260
    %262 = vrot.lane.b32.xlu0 %v48, 112
    %v263 = vpop.permute.xlu0 %262
    %264 = vrot.lane.b32.xlu0 %v50, 112
    %v265 = vpop.permute.xlu0 %264
    %266 = vrot.lane.b32.xlu0 %v51, 112
    %v267 = vpop.permute.xlu0 %266
    %vm268 = vcmp.lt.s32.totalorder %v69, 112
    %v269 = vsel %vm268, %v265, %v267
    %v270 = vsel %vm268, %v263, %v265
    %v271 = vsel %vm268, %v261, %v263
    %v272 = vsel %vm268, %v267, %v261
    %v273 = vlaneseq
    %v274 = vshrl.u32 %v273, 7
    %v275 = vsub.s32 7, %v274
    %v276 = vrot.slane %v52, %v275
    %v277 = vlaneseq
    %v278 = vshrl.u32 %v277, 7
    %v279 = vsub.s32 7, %v278
    %v280 = vrot.slane %v53, %v279
    %v281 = vlaneseq
    %v282 = vshrl.u32 %v281, 7
    %v283 = vsub.s32 7, %v282
    %v284 = vrot.slane %v54, %v283
    %v285 = vlaneseq
    %v286 = vshrl.u32 %v285, 7
    %v287 = vsub.s32 7, %v286
    %v288 = vrot.slane %v55, %v287
    %v289 = vmul.f32 %v271, %v276
    %v290 = vmul.f32 %v270, %v280
    %v291 = vmul.f32 %v269, %v284
    %v292 = vmul.f32 %v272, %v288
    %293 = vrot.lane.b32.xlu0 %v47, 111
    %v294 = vpop.permute.xlu0 %293
    %295 = vrot.lane.b32.xlu0 %v48, 111
    %v296 = vpop.permute.xlu0 %295
    %297 = vrot.lane.b32.xlu0 %v50, 111
    %v298 = vpop.permute.xlu0 %297
    %299 = vrot.lane.b32.xlu0 %v51, 111
    %v300 = vpop.permute.xlu0 %299
    %vm301 = vcmp.lt.s32.totalorder %v69, 111
    %v302 = vsel %vm301, %v298, %v300
    %v303 = vsel %vm301, %v296, %v298
    %v304 = vsel %vm301, %v294, %v296
    %v305 = vsel %vm301, %v300, %v294
    %v306 = vlaneseq
    %v307 = vshrl.u32 %v306, 7
    %v308 = vsub.s32 0, %v307
    %v309 = vrot.slane %v56, %v308
    %v310 = vlaneseq
    %v311 = vshrl.u32 %v310, 7
    %v312 = vsub.s32 0, %v311
    %v313 = vrot.slane %v57, %v312
    %v314 = vlaneseq
    %v315 = vshrl.u32 %v314, 7
    %v316 = vsub.s32 0, %v315
    %v317 = vrot.slane %v58, %v316
    %v318 = vlaneseq
    %v319 = vshrl.u32 %v318, 7
    %v320 = vsub.s32 0, %v319
    %v321 = vrot.slane %v59, %v320
    %v322 = vmul.f32 %v304, %v309
    %v323 = vmul.f32 %v303, %v313
    %v324 = vmul.f32 %v302, %v317
    %v325 = vmul.f32 %v305, %v321
    %v326 = vpack.c.bf16 %v124, %v91
    %v327 = vpack.c.bf16 %v125, %v92
    %v328 = vpack.c.bf16 %v126, %v93
    %v329 = vpack.c.bf16 %v127, %v94
    %v330 = vpack.c.bf16 %v190, %v157
    %v331 = vpack.c.bf16 %v191, %v158
    %v332 = vpack.c.bf16 %v192, %v159
    %v333 = vpack.c.bf16 %v193, %v160
    %v334 = vpack.c.bf16 %v223, %v47
    %v335 = vpack.c.bf16 %v224, %v48
    %v336 = vpack.c.bf16 %v225, %v50
    %v337 = vpack.c.bf16 %v226, %v51
    %v338 = vpack.c.bf16 %v289, %v256
    %v339 = vpack.c.bf16 %v290, %v257
    %v340 = vpack.c.bf16 %v291, %v258
    %v341 = vpack.c.bf16 %v292, %v259
    %v342 = vpack.c.bf16 %v322, %v322
    %v343 = vpack.c.bf16 %v323, %v323
    %v344 = vpack.c.bf16 %v324, %v324
    %v345 = vpack.c.bf16 %v325, %v325
    %v346 = vld [vmem:[%s2] sm:$0xff]
    %v347 = vpack.c.bf16 %v346, %v346
    %vm348 = vcmask 588800
    %v350 = vsel %vm348, %v347, 0
    %vm352 = vcmask 1043456
    %v354 = vsel %vm352, %v342, 0
    %v357 = vsel %vm352, %v343, 0
    %v360 = vsel %vm352, %v344, 0
    %v363 = vsel %vm352, %v345, 0
    %365 = vmatprep.subr.bf16.mxu0 %v327
    %366 = vmatpush1.bf16.msra.mxu0 %v326
    %367 = vmatprep.subr.bf16.mxu0 %v331
    %368 = vmatpush1.bf16.msra.mxu0 %v330
    %369 = vmatprep.subr.bf16.mxu0 %v335
    %370 = vmatpush1.bf16.msra.mxu0 %v334
    %371 = vmatprep.subr.bf16.mxu0 %v339
    %372 = vmatpush1.bf16.msra.mxu0 %v338
    %373 = vmatprep.subr.bf16.mxu0 %v357
    %374 = vmatpush1.bf16.msra.mxu0 %v354
    %375 = vmatprep.subr.bf16.mxu0 0
    %376 = vmatpush1.bf16.msra.mxu0 0
    %377 = vmatprep.subr.bf16.mxu0 0
    %378 = vmatpush1.bf16.msra.mxu0 0
    %379 = vmatprep.subr.bf16.mxu0 0
    %380 = vmatpush1.bf16.msra.mxu0 0
    %381 = vmatprep.subr.bf16.mxu0 0
    %382 = vmatpush1.bf16.msra.mxu0 0
    %383 = vmatprep.subr.bf16.mxu0 0
    %384 = vmatpush1.bf16.msra.mxu0 0
    %385 = vmatprep.subr.bf16.mxu0 0
    %386 = vmatpush1.bf16.msra.mxu0 0
    %387 = vmatprep.subr.bf16.mxu0 0
    %388 = vmatpush1.bf16.msra.mxu0 0
    %389 = vmatprep.subr.bf16.mxu0 0
    %390 = vmatpush1.bf16.msra.mxu0 0
    %391 = vmatprep.subr.bf16.mxu0 0
    %392 = vmatpush1.bf16.msra.mxu0 0
    %393 = vmatprep.subr.bf16.mxu0 0
    %394 = vmatpush1.bf16.msra.mxu0 0
    %395 = vmatprep.subr.bf16.mxu0 0
    %396 = vmatpush1.bf16.msra.mxu0 0
    %397 = vmatprep.mubr.bf16.mxu0 0
    %398 = vmatmul.mubr.bf16.gmra.mrb[0].mxu0 %v350
    %v399 = vpop.f32.mrb[0].mxu0
    %v400 = vadd.f32 0.0, %v399
    %v401 = vpop.f32.mrb[0].mxu0
    %v402 = vadd.f32 0.0, %v401
    %v403 = vpop.f32.mrb[0].mxu0
    %v404 = vpop.f32.mrb[0].mxu0
    %405 = vdwg.mxu0
    %406 = vmatprep.subr.bf16.mxu0 %v329
    %407 = vmatpush1.bf16.msra.mxu0 %v328
    %408 = vmatprep.subr.bf16.mxu0 %v333
    %409 = vmatpush1.bf16.msra.mxu0 %v332
    %410 = vmatprep.subr.bf16.mxu0 %v337
    %411 = vmatpush1.bf16.msra.mxu0 %v336
    %412 = vmatprep.subr.bf16.mxu0 %v341
    %413 = vmatpush1.bf16.msra.mxu0 %v340
    %414 = vmatprep.subr.bf16.mxu0 %v363
    %415 = vmatpush1.bf16.msra.mxu0 %v360
    %416 = vmatprep.subr.bf16.mxu0 0
    %417 = vmatpush1.bf16.msra.mxu0 0
    %418 = vmatprep.subr.bf16.mxu0 0
    %419 = vmatpush1.bf16.msra.mxu0 0
    %420 = vmatprep.subr.bf16.mxu0 0
    %421 = vmatpush1.bf16.msra.mxu0 0
    %422 = vmatprep.subr.bf16.mxu0 0
    %423 = vmatpush1.bf16.msra.mxu0 0
    %424 = vmatprep.subr.bf16.mxu0 0
    %425 = vmatpush1.bf16.msra.mxu0 0
    %426 = vmatprep.subr.bf16.mxu0 0
    %427 = vmatpush1.bf16.msra.mxu0 0
    %428 = vmatprep.subr.bf16.mxu0 0
    %429 = vmatpush1.bf16.msra.mxu0 0
    %430 = vmatprep.subr.bf16.mxu0 0
    %431 = vmatpush1.bf16.msra.mxu0 0
    %432 = vmatprep.subr.bf16.mxu0 0
    %433 = vmatpush1.bf16.msra.mxu0 0
    %434 = vmatprep.subr.bf16.mxu0 0
    %435 = vmatpush1.bf16.msra.mxu0 0
    %436 = vmatprep.subr.bf16.mxu0 0
    %437 = vmatpush1.bf16.msra.mxu0 0
    %438 = vmatprep.mubr.bf16.mxu0 0
    %439 = vmatmul.mubr.bf16.gmra.mrb[0].mxu0 %v350
    %v440 = vpop.f32.mrb[0].mxu0
    %v441 = vadd.f32 0.0, %v440
    %v442 = vpop.f32.mrb[0].mxu0
    %v443 = vadd.f32 0.0, %v442
    %v444 = vpop.f32.mrb[0].mxu0
    %v445 = vpop.f32.mrb[0].mxu0
    %446 = vdwg.mxu0
    %v447 = vadd.f32 %v400, %v402
    %v448 = vadd.f32 %v447, %v441
    %v449 = vadd.f32 %v448, %v443
    %450 = vadd.xlane.f32.xlu0 %v449
    %v451 = vpop.xlane.xlu0 %450
    %v452 = vmul.f32 %v451, 0.001953125
    %v453 = vsub.f32 %v400, %v452
    %v454 = vsub.f32 %v402, %v452
    %v455 = vsub.f32 %v441, %v452
    %v456 = vsub.f32 %v443, %v452
    %v457 = vmul.f32 %v453, %v453
    %v458 = vmul.f32 %v454, %v454
    %v459 = vmul.f32 %v455, %v455
    %v460 = vmul.f32 %v456, %v456
    %v461 = vadd.f32 %v457, %v458
    %v462 = vadd.f32 %v461, %v459
    %v463 = vadd.f32 %v462, %v460
    %464 = vadd.xlane.f32.xlu0 %v463
    %v465 = vpop.xlane.xlu0 %464
    %v466 = vmul.f32 %v465, 0.001953125
    %v467 = vadd.f32 %v466, 1e-05
    %v468 = vrsqrt.pop %v467
    %v469 = vld [vmem:[%s3] sm:$0xff]
    %v470 = vmul.f32 %v469, %v468
    %472 = vset.pattern.permute.xlu0 0
    %473 = vperm.xlu0 %472, %v470
    %v474 = vpop.permute.xlu0 %473
    %v476 = vmul.f32 %v453, %v474
    %v477 = vmul.f32 %v454, %v474
    %v478 = vmul.f32 %v455, %v474
    %v479 = vmul.f32 %v456, %v474
    %481 = vset.pattern.permute.xlu0 1
    %482 = vperm.xlu0 %481, %v469
    %v483 = vpop.permute.xlu0 %482
    %v485 = vadd.f32 %v476, %v483
    %v486 = vadd.f32 %v477, %v483
    %v487 = vadd.f32 %v478, %v483
    %v488 = vadd.f32 %v479, %v483
    %v489 = vmax.f32 %v485, 0.0
    %v490 = vmax.f32 %v486, 0.0
    %v491 = vmax.f32 %v487, 0.0
    %v492 = vmax.f32 %v488, 0.0
    %493 = vst [vmem:[#allocation7] sm:$0xff] %v489
    %494 = vst [vmem:[#allocation7 + $0x8] sm:$0xff] %v490
    %s495 = scalar_lea.vmem [#allocation7], 16
    %496 = vst [vmem:[%s495] sm:$0xff] %v491
    %497 = vst [vmem:[%s495 + $0x8] sm:$0xff] %v492
    // Predicated region
    $region26: #{tpu_custom_call.1} parent=1 // pred_check
      _
    $region27: #{tpu_custom_call.1} parent=1 // pred_check_branch
      %499 = sbr.rel (0) target = $region29
    $region28: #{tpu_custom_call.1} parent=1 // pred_region
      %s501 = ssub.s32 512, 512
      %502 = vsyncadd [#allocation4], %s501
      %s503 = sshll.u32 [#allocation7], 4
      %s504 = int_to_ptr.vmem [resolvable:$true] %s503
      %509 = dma.vmem_to_hbm [thread:$0]  %s504, 512, %s4, [#allocation4], 256, 256, 16
    $region29: #{tpu_custom_call.1} parent=1 // pred_fallthru
      _
    // Predicated region
    $region30: #{tpu_custom_call.1} parent=1 // pred_check
      _
    $region31: #{tpu_custom_call.1} parent=1 // pred_check_branch
      %511 = sbr.rel (0) target = $region33
    $region32: #{tpu_custom_call.1} parent=1 // pred_region
      %512 = dma.done [#allocation4], 512
    $region33: #{tpu_custom_call.1} parent=1 // pred_fallthru
      _
    %513 = vsyncpa [#allocation3], 1
    %514 = vsyncpa [#allocation6], 1
    %515 = vsyncpa [#allocation4], 1

</llo_original>
